<compile_context>
chip_gen: v7x
topology: tpu7x:2x2x1
jax: 0.10.0
libtpu: 0.0.40
codegen_flags: <defaults>
</compile_context>

<pallas_src>
import functools

import jax
import jax.numpy as jnp
from jax.experimental import pallas as pl
from jax.experimental.pallas import tpu as pltpu

IN_FEATURES = 512
N_HID = 32
OUT_FEATURES = 1
BN_EPS = 1e-5


def _round_up(x, m):
    return ((x + m - 1) // m) * m


def mlp_kernel(x_ref, w1_ref, b1_ref, w2_ref, b2_ref, o_ref):
    # x_ref:  (TB, 512)  streaming batch tile (f32 or bf16)
    # w1_ref: (512, 32)  resident  Linear1 weight, transposed (lane-dense hidden)
    # b1_ref: (1, 32)    resident  Linear1 bias
    # w2_ref: (32, 1)    resident  Linear2 weight with eval-BN scale folded in
    # b2_ref: (1, 1)     resident  Linear2 bias with eval-BN shift folded in
    # o_ref:  (TB, 1)
    x = x_ref[...]

    # Linear(512 -> 32) on the MXU, f32 accumulation.
    h = jnp.dot(x, w1_ref[...], preferred_element_type=jnp.float32) + b1_ref[...]

    # ReLU (the eval-mode BatchNorm affine is already folded into w2/b2).
    h = jnp.maximum(h, 0.0)

    # Linear(32 -> 1), also on the MXU (tiny; MXU is ~idle after the first matmul).
    logits = jnp.dot(h, w2_ref[...], preferred_element_type=jnp.float32) + b2_ref[...]

    o_ref[...] = logits.astype(o_ref.dtype)


@functools.partial(jax.jit, static_argnames=("block_b",))
def advanced_nn_classifier(embeddings, w1, b1, gamma, beta, running_mean,
                           running_var, w2, b2, *, block_b=4096):
    """Forward pass of AdvancedNNClassifier (eval mode).

    embeddings:   (B, 512) f32 (or bf16)
    w1:           (32, 512) f32   (nn.Linear(512, 32) weight)
    b1:           (32,)     f32
    gamma, beta:  (32,)     f32   (BatchNorm1d affine)
    running_mean: (32,)     f32
    running_var:  (32,)     f32
    w2:           (1, 32)   f32   (nn.Linear(32, 1) weight)
    b2:           (1,)      f32
    returns:      (B, 1)    f32 logits
    """
    B, D = embeddings.shape
    assert D == IN_FEATURES

    # --- Fold eval-mode BatchNorm into the second Linear (exact algebra):
    #   sum_k (relu(z)_k*scale_k + shift_k) * w2_k + b2
    # = relu(z) @ (scale*w2).T + (shift . w2 + b2)
    inv_std = jax.lax.rsqrt(running_var.astype(jnp.float32) + BN_EPS)
    scale = gamma * inv_std                          # (32,)
    shift = beta - running_mean * scale              # (32,)

    w1_t = w1.T.astype(jnp.float32)                                  # (512, 32)
    b1_2d = b1.reshape(1, N_HID).astype(jnp.float32)
    w2_flat = w2.reshape(N_HID).astype(jnp.float32)                  # (32,)
    w2_eff = (w2_flat * scale).reshape(N_HID, OUT_FEATURES)          # (32, 1)
    b2_eff = (b2.astype(jnp.float32)
              + jnp.dot(shift, w2_flat)).reshape(1, OUT_FEATURES)    # (1, 1)

    # --- Batch tile: multiple of 8 (f32/bf16 sublane packing), capped at
    # ~half the (8-rounded) batch so a v7x chip keeps both TensorCores busy,
    # and at block_b so the double-buffered input stays modest in VMEM.
    # No jnp.pad: the grid is ragged and the last partial tile is masked.
    b8 = _round_up(B, 8)                         # conceptual only, never materialized
    tb = min(block_b, _round_up(pl.cdiv(b8, 2), 8))
    tb = max(tb, 8)
    grid = (pl.cdiv(B, tb),)

    itemsize = embeddings.dtype.itemsize
    in_block_bytes = tb * IN_FEATURES * itemsize
    out_block_bytes = tb * OUT_FEATURES * 4
    # input + output double buffers, plus resident weights / compiler headroom.
    vmem_limit = int(2 * (in_block_bytes + out_block_bytes) + (8 << 20))

    weight_bytes = (IN_FEATURES * N_HID + N_HID + N_HID + OUT_FEATURES) * 4
    cost = pl.CostEstimate(
        flops=2 * B * IN_FEATURES * N_HID + 2 * B * N_HID * OUT_FEATURES,
        transcendentals=0,
        bytes_accessed=B * IN_FEATURES * itemsize
                       + B * OUT_FEATURES * 4
                       + weight_bytes,
    )

    resident = lambda i: (0, 0)   # weights DMA'd once, stay resident in VMEM

    out = pl.pallas_call(
        mlp_kernel,
        out_shape=jax.ShapeDtypeStruct((B, OUT_FEATURES), jnp.float32),
        grid=grid,
        in_specs=[
            pl.BlockSpec((tb, IN_FEATURES), lambda i: (i, 0)),      # streaming x
            pl.BlockSpec((IN_FEATURES, N_HID), resident),           # w1_t
            pl.BlockSpec((1, N_HID), resident),                     # b1
            pl.BlockSpec((N_HID, OUT_FEATURES), resident),          # w2 (BN-folded)
            pl.BlockSpec((1, OUT_FEATURES), resident),              # b2 (BN-folded)
        ],
        out_specs=pl.BlockSpec((tb, OUT_FEATURES), lambda i: (i, 0)),
        compiler_params=pltpu.CompilerParams(
            dimension_semantics=("parallel",),     # batch tiles independent
            vmem_limit_bytes=vmem_limit,
        ),
        cost_estimate=cost,
    )(embeddings, w1_t, b1_2d, w2_eff, b2_eff)

    return out


if __name__ == "__main__":
    key = jax.random.PRNGKey(0)
    (k_x, k_w1, k_b1, k_g, k_be, k_m, k_v, k_w2, k_b2) = jax.random.split(key, 9)

    # nn.Linear(512, 32) init shapes, uniform(-1/sqrt(fan_in), 1/sqrt(fan_in)).
    bound1 = 1.0 / jnp.sqrt(jnp.float32(IN_FEATURES))
    w1 = jax.random.uniform(k_w1, (N_HID, IN_FEATURES), jnp.float32, -bound1, bound1)
    b1 = jax.random.uniform(k_b1, (N_HID,), jnp.float32, -bound1, bound1)

    # BatchNorm1d(32) running stats + affine (non-trivial values).
    gamma = 1.0 + 0.1 * jax.random.normal(k_g, (N_HID,), jnp.float32)
    beta = 0.1 * jax.random.normal(k_be, (N_HID,), jnp.float32)
    running_mean = 0.1 * jax.random.normal(k_m, (N_HID,), jnp.float32)
    running_var = jax.random.uniform(k_v, (N_HID,), jnp.float32, 0.5, 1.5)

    # nn.Linear(32, 1) init.
    bound2 = 1.0 / jnp.sqrt(jnp.float32(N_HID))
    w2 = jax.random.uniform(k_w2, (OUT_FEATURES, N_HID), jnp.float32, -bound2, bound2)
    b2 = jax.random.uniform(k_b2, (OUT_FEATURES,), jnp.float32, -bound2, bound2)

    def reference(x):
        h = x @ w1.T + b1
        h = jnp.maximum(h, 0.0)
        h = (h - running_mean) / jnp.sqrt(running_var + BN_EPS) * gamma + beta
        return h @ w2.T + b2

    # Aligned batch and a ragged batch (exercises the partial last tile /
    # masked writeback path that replaced the wrapper-side jnp.pad).
    for batch in (8, 300):
        x = jax.random.normal(jax.random.fold_in(k_x, batch),
                              (batch, IN_FEATURES), dtype=jnp.float32)
        logits = advanced_nn_classifier(x, w1, b1, gamma, beta,
                                        running_mean, running_var, w2, b2)
        logits = jax.block_until_ready(logits)
        assert logits.shape == (batch, OUT_FEATURES)
        assert jnp.allclose(logits, reference(x), atol=1e-4, rtol=1e-4)

    print("KERNEL_OK")
</pallas_src>

<mosaic_0001>
module attributes {stable_mosaic.version = 11 : i64} {
  func.func @mlp_kernel(%arg0: i32, %arg1: memref<8x512xf32, #tpu.memory_space<vmem>>, %arg2: memref<512x32xf32, #tpu.memory_space<vmem>>, %arg3: memref<1x32xf32, #tpu.memory_space<vmem>>, %arg4: memref<32x1xf32, #tpu.memory_space<vmem>>, %arg5: memref<1x1xf32, #tpu.memory_space<vmem>>, %arg6: memref<8x1xf32, #tpu.memory_space<vmem>>) attributes {dimension_semantics = [#tpu.dimension_semantics<parallel>], iteration_bounds = array<i64: 1>, scalar_prefetch = 0 : i64, scratch_operands = 0 : i64, tpu.core_type = #tpu.core_type<tc>, window_params = [{transform_indices = @transform_0, window_bounds = array<i64: 8, 512>}, {pipeline_mode = #tpu.pipeline_mode<synchronous>, transform_indices = @transform_1, window_bounds = array<i64: 512, 32>}, {pipeline_mode = #tpu.pipeline_mode<synchronous>, transform_indices = @transform_2, window_bounds = array<i64: 1, 32>}, {pipeline_mode = #tpu.pipeline_mode<synchronous>, transform_indices = @transform_3, window_bounds = array<i64: 32, 1>}, {pipeline_mode = #tpu.pipeline_mode<synchronous>, transform_indices = @transform_4, window_bounds = array<i64: 1, 1>}, {transform_indices = @transform_5, window_bounds = array<i64: 8, 1>}]} {
    %c0 = arith.constant 0 : index
    %c0_0 = arith.constant 0 : index
    %0 = vector.load %arg1[%c0, %c0_0] : memref<8x512xf32, #tpu.memory_space<vmem>>, vector<8x512xf32>
    %c0_1 = arith.constant 0 : index
    %c0_2 = arith.constant 0 : index
    %1 = vector.load %arg2[%c0_1, %c0_2] : memref<512x32xf32, #tpu.memory_space<vmem>>, vector<512x32xf32>
    %cst = arith.constant dense<0.000000e+00> : vector<8x32xf32>
    %2 = tpu.matmul %0, %1, %cst {dimension_numbers = #tpu.dot_dimension_numbers<[1], [0], [0], [1], [0, 0, 1, 1], [], []>} : vector<8x512xf32>, vector<512x32xf32>, vector<8x32xf32> -> vector<8x32xf32>
    %c0_3 = arith.constant 0 : index
    %c0_4 = arith.constant 0 : index
    %3 = vector.load %arg3[%c0_3, %c0_4] : memref<1x32xf32, #tpu.memory_space<vmem>>, vector<1x32xf32>
    %4 = vector.broadcast %3 : vector<1x32xf32> to vector<8x32xf32>
    %5 = arith.addf %2, %4 : vector<8x32xf32>
    %cst_5 = arith.constant 0.000000e+00 : f32
    %6 = vector.broadcast %cst_5 : f32 to vector<8x32xf32>
    %7 = arith.maximumf %5, %6 : vector<8x32xf32>
    %c0_6 = arith.constant 0 : index
    %c0_7 = arith.constant 0 : index
    %8 = vector.load %arg4[%c0_6, %c0_7] : memref<32x1xf32, #tpu.memory_space<vmem>>, vector<32x1xf32>
    %cst_8 = arith.constant dense<0.000000e+00> : vector<8x1xf32>
    %9 = tpu.matmul %7, %8, %cst_8 {dimension_numbers = #tpu.dot_dimension_numbers<[1], [0], [0], [1], [0, 0, 1, 1], [], []>} : vector<8x32xf32>, vector<32x1xf32>, vector<8x1xf32> -> vector<8x1xf32>
    %c0_9 = arith.constant 0 : index
    %c0_10 = arith.constant 0 : index
    %10 = vector.load %arg5[%c0_9, %c0_10] : memref<1x1xf32, #tpu.memory_space<vmem>>, vector<1x1xf32>
    %11 = vector.broadcast %10 : vector<1x1xf32> to vector<8x1xf32>
    %12 = arith.addf %9, %11 : vector<8x1xf32>
    %c0_11 = arith.constant 0 : index
    %c0_12 = arith.constant 0 : index
    %13 = vector.load %arg6[%c0_11, %c0_12] : memref<8x1xf32, #tpu.memory_space<vmem>>, vector<8x1xf32>
    tpu.vector_store %arg6[%c0_11, %c0_12], %12 {strides = array<i32>} : memref<8x1xf32, #tpu.memory_space<vmem>>, vector<8x1xf32>,
    return
  }
  func.func @transform_0(%arg0: i32) -> (i32, i32) {
    %c0_i32 = arith.constant 0 : i32
    %c0_i32_0 = arith.constant 0 : i32
    return %arg0, %c0_i32 : i32, i32
  }
  func.func @transform_1(%arg0: i32) -> (i32, i32) {
    %c0_i32 = arith.constant 0 : i32
    %c0_i32_0 = arith.constant 0 : i32
    %c0_i32_1 = arith.constant 0 : i32
    return %c0_i32, %c0_i32_0 : i32, i32
  }
  func.func @transform_2(%arg0: i32) -> (i32, i32) {
    %c0_i32 = arith.constant 0 : i32
    %c0_i32_0 = arith.constant 0 : i32
    %c0_i32_1 = arith.constant 0 : i32
    return %c0_i32, %c0_i32_0 : i32, i32
  }
  func.func @transform_3(%arg0: i32) -> (i32, i32) {
    %c0_i32 = arith.constant 0 : i32
    %c0_i32_0 = arith.constant 0 : i32
    %c0_i32_1 = arith.constant 0 : i32
    return %c0_i32, %c0_i32_0 : i32, i32
  }
  func.func @transform_4(%arg0: i32) -> (i32, i32) {
    %c0_i32 = arith.constant 0 : i32
    %c0_i32_0 = arith.constant 0 : i32
    %c0_i32_1 = arith.constant 0 : i32
    return %c0_i32, %c0_i32_0 : i32, i32
  }
  func.func @transform_5(%arg0: i32) -> (i32, i32) {
    %c0_i32 = arith.constant 0 : i32
    %c0_i32_0 = arith.constant 0 : i32
    return %arg0, %c0_i32 : i32, i32
  }
}

</mosaic_0001>

<llo_original>
// kernel: advanced_nn_classifier.1
$region0: #{advanced_nn_classifier.1}
  #allocation0 [shape = 'u32[]', space=smem, size = 0x4, offset = 0x4, fixed_abs, tag = 'smem constant byte address 0x4 - core index']
  #allocation1 [shape = 'u32[144,128]{1,0:T(1,128)}', space=vmem, size = 0x12000, scoped, tag = 'internal scratch']
  #allocation2 [shape = 'f32[1,1]{1,0:T(1,128)S(1)}', space=vmem, size = 0x200, scoped, tag = 'scoped memory for advanced_nn_classifier.1']
  %s0 = inlined_call_operand.vmem [shape: f32[8,512], index: 0, kind: input, shape index: {}]
  %s1 = inlined_call_operand.vmem [shape: f32[512,32], index: 1, kind: input, shape index: {}]
  %s2 = inlined_call_operand.vmem [shape: f32[1,32], index: 2, kind: input, shape index: {}]
  %s3 = inlined_call_operand.vmem [shape: f32[32,1], index: 3, kind: input, shape index: {}]
  %s4 = inlined_call_operand.<no memory space> [shape: f32[1,1], index: 4, kind: input, shape index: {}]
  %s5 = inlined_call_operand.vmem [shape: f32[8,1], index: 5, kind: output, shape index: {}]
  %s6 = sld [smem:[#allocation0]]
  $region30: #{advanced_nn_classifier.1} parent=0
    _
  %s8 = ssub.s32 1, %s6
  %s9 = scalar_select 0, %s8, %s6
  %v10 = vstv %s4
  %11 = vst [vmem:[#allocation2] sm:$0x1] %v10
  // Predicated region
  $region2: #{advanced_nn_classifier.1} parent=0 // pred_check
    _
  $region3: #{advanced_nn_classifier.1} parent=0 // pred_check_branch
    %13 = sbr.rel (0) target = $region5
  $region4: #{advanced_nn_classifier.1} parent=0 // pred_region
    _
  $region5: #{advanced_nn_classifier.1} parent=0 // pred_fallthru
    _
  // Predicated region
  $region6: #{advanced_nn_classifier.1} parent=0 // pred_check
    _
  $region7: #{advanced_nn_classifier.1} parent=0 // pred_check_branch
    %15 = sbr.rel (0) target = $region9
  $region8: #{advanced_nn_classifier.1} parent=0 // pred_region
    _
  $region9: #{advanced_nn_classifier.1} parent=0 // pred_fallthru
    _
  // Predicated region
  $region10: #{advanced_nn_classifier.1} parent=0 // pred_check
    _
  $region11: #{advanced_nn_classifier.1} parent=0 // pred_check_branch
    %17 = sbr.rel (0) target = $region13
  $region12: #{advanced_nn_classifier.1} parent=0 // pred_region
    _
  $region13: #{advanced_nn_classifier.1} parent=0 // pred_fallthru
    _
  // Predicated region
  $region14: #{advanced_nn_classifier.1} parent=0 // pred_check
    _
  $region15: #{advanced_nn_classifier.1} parent=0 // pred_check_branch
    %19 = sbr.rel (0) target = $region17
  $region16: #{advanced_nn_classifier.1} parent=0 // pred_region
    _
  $region17: #{advanced_nn_classifier.1} parent=0 // pred_fallthru
    _
  // Predicated region
  $region18: #{advanced_nn_classifier.1} parent=0 // pred_check
    _
  $region19: #{advanced_nn_classifier.1} parent=0 // pred_check_branch
    %21 = sbr.rel (0) target = $region21
  $region20: #{advanced_nn_classifier.1} parent=0 // pred_region
    _
  $region21: #{advanced_nn_classifier.1} parent=0 // pred_fallthru
    _
  %v22 = vld [vmem:[%s0] sm:$0xff]
  %v23 = vld [vmem:[%s0 + $0x8] sm:$0xff]
  %v24 = vld [vmem:[%s0 + $0x10] sm:$0xff]
  %v25 = vld [vmem:[%s0 + $0x18] sm:$0xff]
  %v26 = vld [vmem:[%s1] sm:$0xff]
  %v27 = vld [vmem:[%s1 + $0x8] sm:$0xff]
  %v28 = vld [vmem:[%s1 + $0x10] sm:$0xff]
  %v29 = vld [vmem:[%s1 + $0x18] sm:$0xff]
  %v30 = vld [vmem:[%s1 + $0x20] sm:$0xff]
  %v31 = vld [vmem:[%s1 + $0x28] sm:$0xff]
  %v32 = vld [vmem:[%s1 + $0x30] sm:$0xff]
  %v33 = vld [vmem:[%s1 + $0x38] sm:$0xff]
  %v34 = vld [vmem:[%s1 + $0x40] sm:$0xff]
  %v35 = vld [vmem:[%s1 + $0x48] sm:$0xff]
  %v36 = vld [vmem:[%s1 + $0x50] sm:$0xff]
  %v37 = vld [vmem:[%s1 + $0x58] sm:$0xff]
  %v38 = vld [vmem:[%s1 + $0x60] sm:$0xff]
  %v39 = vld [vmem:[%s1 + $0x68] sm:$0xff]
  %v40 = vld [vmem:[%s1 + $0x70] sm:$0xff]
  %v41 = vld [vmem:[%s1 + $0x78] sm:$0xff]
  %v42 = vld [vmem:[%s1 + $0x80] sm:$0xff]
  %v43 = vld [vmem:[%s1 + $0x88] sm:$0xff]
  %v44 = vld [vmem:[%s1 + $0x90] sm:$0xff]
  %v45 = vld [vmem:[%s1 + $0x98] sm:$0xff]
  %v46 = vld [vmem:[%s1 + $0xa0] sm:$0xff]
  %v47 = vld [vmem:[%s1 + $0xa8] sm:$0xff]
  %v48 = vld [vmem:[%s1 + $0xb0] sm:$0xff]
  %v49 = vld [vmem:[%s1 + $0xb8] sm:$0xff]
  %v50 = vld [vmem:[%s1 + $0xc0] sm:$0xff]
  %v51 = vld [vmem:[%s1 + $0xc8] sm:$0xff]
  %v52 = vld [vmem:[%s1 + $0xd0] sm:$0xff]
  %v53 = vld [vmem:[%s1 + $0xd8] sm:$0xff]
  %v54 = vld [vmem:[%s1 + $0xe0] sm:$0xff]
  %v55 = vld [vmem:[%s1 + $0xe8] sm:$0xff]
  %v56 = vld [vmem:[%s1 + $0xf0] sm:$0xff]
  %v57 = vld [vmem:[%s1 + $0xf8] sm:$0xff]
  %v58 = vld [vmem:[%s1 + $0x100] sm:$0xff]
  %v59 = vld [vmem:[%s1 + $0x108] sm:$0xff]
  %v60 = vld [vmem:[%s1 + $0x110] sm:$0xff]
  %v61 = vld [vmem:[%s1 + $0x118] sm:$0xff]
  %v62 = vld [vmem:[%s1 + $0x120] sm:$0xff]
  %v63 = vld [vmem:[%s1 + $0x128] sm:$0xff]
  %v64 = vld [vmem:[%s1 + $0x130] sm:$0xff]
  %v65 = vld [vmem:[%s1 + $0x138] sm:$0xff]
  %v66 = vld [vmem:[%s1 + $0x140] sm:$0xff]
  %v67 = vld [vmem:[%s1 + $0x148] sm:$0xff]
  %v68 = vld [vmem:[%s1 + $0x150] sm:$0xff]
  %v69 = vld [vmem:[%s1 + $0x158] sm:$0xff]
  %v70 = vld [vmem:[%s1 + $0x160] sm:$0xff]
  %v71 = vld [vmem:[%s1 + $0x168] sm:$0xff]
  %v72 = vld [vmem:[%s1 + $0x170] sm:$0xff]
  %v73 = vld [vmem:[%s1 + $0x178] sm:$0xff]
  %v74 = vld [vmem:[%s1 + $0x180] sm:$0xff]
  %v75 = vld [vmem:[%s1 + $0x188] sm:$0xff]
  %v76 = vld [vmem:[%s1 + $0x190] sm:$0xff]
  %v77 = vld [vmem:[%s1 + $0x198] sm:$0xff]
  %v78 = vld [vmem:[%s1 + $0x1a0] sm:$0xff]
  %v79 = vld [vmem:[%s1 + $0x1a8] sm:$0xff]
  %v80 = vld [vmem:[%s1 + $0x1b0] sm:$0xff]
  %v81 = vld [vmem:[%s1 + $0x1b8] sm:$0xff]
  %v82 = vld [vmem:[%s1 + $0x1c0] sm:$0xff]
  %v83 = vld [vmem:[%s1 + $0x1c8] sm:$0xff]
  %v84 = vld [vmem:[%s1 + $0x1d0] sm:$0xff]
  %v85 = vld [vmem:[%s1 + $0x1d8] sm:$0xff]
  %v86 = vld [vmem:[%s1 + $0x1e0] sm:$0xff]
  %v87 = vld [vmem:[%s1 + $0x1e8] sm:$0xff]
  %v88 = vld [vmem:[%s1 + $0x1f0] sm:$0xff]
  %v89 = vld [vmem:[%s1 + $0x1f8] sm:$0xff]
  %v90 = vld [vmem:[%s2] sm:$0x1]
  %v92 = vlaneseq
  %v93 = vshrl.u32 %v92, 7
  %v94 = vsub.s32 0, %v93
  %v95 = vrot.slane %v90, %v94
  %97 = vmatprep.subr.mxu0 0.0
  %98 = vmatpush1.msra.mxu0 %v26
  %99 = vmatprep.subr.mxu0 0.0
  %100 = vmatpush1.msra.mxu0 %v27
  %101 = vmatprep.subr.mxu0 0.0
  %102 = vmatpush1.msra.mxu0 %v28
  %103 = vmatprep.subr.mxu0 0.0
  %104 = vmatpush1.msra.mxu0 %v29
  %105 = vmatprep.subr.mxu0 0.0
  %106 = vmatpush1.msra.mxu0 %v30
  %107 = vmatprep.subr.mxu0 0.0
  %108 = vmatpush1.msra.mxu0 %v31
  %109 = vmatprep.subr.mxu0 0.0
  %110 = vmatpush1.msra.mxu0 %v32
  %111 = vmatprep.subr.mxu0 0.0
  %112 = vmatpush1.msra.mxu0 %v33
  %113 = vmatprep.subr.mxu0 0.0
  %114 = vmatpush1.msra.mxu0 %v34
  %115 = vmatprep.subr.mxu0 0.0
  %116 = vmatpush1.msra.mxu0 %v35
  %117 = vmatprep.subr.mxu0 0.0
  %118 = vmatpush1.msra.mxu0 %v36
  %119 = vmatprep.subr.mxu0 0.0
  %120 = vmatpush1.msra.mxu0 %v37
  %121 = vmatprep.subr.mxu0 0.0
  %122 = vmatpush1.msra.mxu0 %v38
  %123 = vmatprep.subr.mxu0 0.0
  %124 = vmatpush1.msra.mxu0 %v39
  %125 = vmatprep.subr.mxu0 0.0
  %126 = vmatpush1.msra.mxu0 %v40
  %127 = vmatprep.subr.mxu0 0.0
  %128 = vmatpush1.msra.mxu0 %v41
  %129 = vmatprep.subr.mxu0 0.0
  %130 = vmatpush1.msra.mxu0 %v42
  %131 = vmatprep.subr.mxu0 0.0
  %132 = vmatpush1.msra.mxu0 %v43
  %133 = vmatprep.subr.mxu0 0.0
  %134 = vmatpush1.msra.mxu0 %v44
  %135 = vmatprep.subr.mxu0 0.0
  %136 = vmatpush1.msra.mxu0 %v45
  %137 = vmatprep.subr.mxu0 0.0
  %138 = vmatpush1.msra.mxu0 %v46
  %139 = vmatprep.subr.mxu0 0.0
  %140 = vmatpush1.msra.mxu0 %v47
  %141 = vmatprep.subr.mxu0 0.0
  %142 = vmatpush1.msra.mxu0 %v48
  %143 = vmatprep.subr.mxu0 0.0
  %144 = vmatpush1.msra.mxu0 %v49
  %145 = vmatprep.subr.mxu0 0.0
  %146 = vmatpush1.msra.mxu0 %v50
  %147 = vmatprep.subr.mxu0 0.0
  %148 = vmatpush1.msra.mxu0 %v51
  %149 = vmatprep.subr.mxu0 0.0
  %150 = vmatpush1.msra.mxu0 %v52
  %151 = vmatprep.subr.mxu0 0.0
  %152 = vmatpush1.msra.mxu0 %v53
  %153 = vmatprep.subr.mxu0 0.0
  %154 = vmatpush1.msra.mxu0 %v54
  %155 = vmatprep.subr.mxu0 0.0
  %156 = vmatpush1.msra.mxu0 %v55
  %157 = vmatprep.subr.mxu0 0.0
  %158 = vmatpush1.msra.mxu0 %v56
  %159 = vmatprep.subr.mxu0 0.0
  %160 = vmatpush1.msra.mxu0 %v57
  %161 = vmatprep.mubr.f32.mxu0 %v23
  %162 = vmatmul.mubr.f32.gmra.mrb[0].mxu0 %v22
  %v163 = vpop.f32.mrb[0].mxu0
  %v164 = vadd.f32 %v95, %v163
  %v165 = vpop.f32.mrb[0].mxu0
  %166 = vdwg.mxu0
  %167 = vmatprep.subr.mxu0 0.0
  %168 = vmatpush1.msra.mxu0 %v58
  %169 = vmatprep.subr.mxu0 0.0
  %170 = vmatpush1.msra.mxu0 %v59
  %171 = vmatprep.subr.mxu0 0.0
  %172 = vmatpush1.msra.mxu0 %v60
  %173 = vmatprep.subr.mxu0 0.0
  %174 = vmatpush1.msra.mxu0 %v61
  %175 = vmatprep.subr.mxu0 0.0
  %176 = vmatpush1.msra.mxu0 %v62
  %177 = vmatprep.subr.mxu0 0.0
  %178 = vmatpush1.msra.mxu0 %v63
  %179 = vmatprep.subr.mxu0 0.0
  %180 = vmatpush1.msra.mxu0 %v64
  %181 = vmatprep.subr.mxu0 0.0
  %182 = vmatpush1.msra.mxu0 %v65
  %183 = vmatprep.subr.mxu0 0.0
  %184 = vmatpush1.msra.mxu0 %v66
  %185 = vmatprep.subr.mxu0 0.0
  %186 = vmatpush1.msra.mxu0 %v67
  %187 = vmatprep.subr.mxu0 0.0
  %188 = vmatpush1.msra.mxu0 %v68
  %189 = vmatprep.subr.mxu0 0.0
  %190 = vmatpush1.msra.mxu0 %v69
  %191 = vmatprep.subr.mxu0 0.0
  %192 = vmatpush1.msra.mxu0 %v70
  %193 = vmatprep.subr.mxu0 0.0
  %194 = vmatpush1.msra.mxu0 %v71
  %195 = vmatprep.subr.mxu0 0.0
  %196 = vmatpush1.msra.mxu0 %v72
  %197 = vmatprep.subr.mxu0 0.0
  %198 = vmatpush1.msra.mxu0 %v73
  %199 = vmatprep.subr.mxu0 0.0
  %200 = vmatpush1.msra.mxu0 %v74
  %201 = vmatprep.subr.mxu0 0.0
  %202 = vmatpush1.msra.mxu0 %v75
  %203 = vmatprep.subr.mxu0 0.0
  %204 = vmatpush1.msra.mxu0 %v76
  %205 = vmatprep.subr.mxu0 0.0
  %206 = vmatpush1.msra.mxu0 %v77
  %207 = vmatprep.subr.mxu0 0.0
  %208 = vmatpush1.msra.mxu0 %v78
  %209 = vmatprep.subr.mxu0 0.0
  %210 = vmatpush1.msra.mxu0 %v79
  %211 = vmatprep.subr.mxu0 0.0
  %212 = vmatpush1.msra.mxu0 %v80
  %213 = vmatprep.subr.mxu0 0.0
  %214 = vmatpush1.msra.mxu0 %v81
  %215 = vmatprep.subr.mxu0 0.0
  %216 = vmatpush1.msra.mxu0 %v82
  %217 = vmatprep.subr.mxu0 0.0
  %218 = vmatpush1.msra.mxu0 %v83
  %219 = vmatprep.subr.mxu0 0.0
  %220 = vmatpush1.msra.mxu0 %v84
  %221 = vmatprep.subr.mxu0 0.0
  %222 = vmatpush1.msra.mxu0 %v85
  %223 = vmatprep.subr.mxu0 0.0
  %224 = vmatpush1.msra.mxu0 %v86
  %225 = vmatprep.subr.mxu0 0.0
  %226 = vmatpush1.msra.mxu0 %v87
  %227 = vmatprep.subr.mxu0 0.0
  %228 = vmatpush1.msra.mxu0 %v88
  %229 = vmatprep.subr.mxu0 0.0
  %230 = vmatpush1.msra.mxu0 %v89
  %231 = vmatprep.mubr.f32.mxu0 %v25
  %232 = vmatmul.mubr.f32.gmra.mrb[0].mxu0 %v24
  %v233 = vpop.f32.mrb[0].mxu0
  %v234 = vadd.f32 %v164, %v233
  %v235 = vpop.f32.mrb[0].mxu0
  %236 = vdwg.mxu0
  %v237 = vmax.f32 %v234, 0.0
  %v238 = vld [vmem:[%s3] sm:$0xff]
  %v239 = vld [vmem:[%s3 + $0x8] sm:$0xff]
  %v240 = vld [vmem:[%s3 + $0x10] sm:$0xff]
  %v241 = vld [vmem:[%s3 + $0x18] sm:$0xff]
  %v242 = vld [vmem:[#allocation2] sm:$0x1]
  %v244 = vlaneseq
  %v245 = vshrl.u32 %v244, 7
  %v246 = vsub.s32 0, %v245
  %v247 = vrot.slane %v242, %v246
  %vm249 = vcmask 261120
  %v251 = vsel %vm249, %v237, 0
  %253 = vmatprep.subr.mxu0 0.0
  %254 = vmatpush1.msra.mxu0 %v238
  %255 = vmatprep.subr.mxu0 0.0
  %256 = vmatpush1.msra.mxu0 %v239
  %257 = vmatprep.subr.mxu0 0.0
  %258 = vmatpush1.msra.mxu0 %v240
  %259 = vmatprep.subr.mxu0 0.0
  %260 = vmatpush1.msra.mxu0 %v241
  %261 = vmatprep.subr.mxu0 0.0
  %262 = vmatpush1.msra.mxu0 0.0
  %263 = vmatprep.subr.mxu0 0.0
  %264 = vmatpush1.msra.mxu0 0.0
  %265 = vmatprep.subr.mxu0 0.0
  %266 = vmatpush1.msra.mxu0 0.0
  %267 = vmatprep.subr.mxu0 0.0
  %268 = vmatpush1.msra.mxu0 0.0
  %269 = vmatprep.subr.mxu0 0.0
  %270 = vmatpush1.msra.mxu0 0.0
  %271 = vmatprep.subr.mxu0 0.0
  %272 = vmatpush1.msra.mxu0 0.0
  %273 = vmatprep.subr.mxu0 0.0
  %274 = vmatpush1.msra.mxu0 0.0
  %275 = vmatprep.subr.mxu0 0.0
  %276 = vmatpush1.msra.mxu0 0.0
  %277 = vmatprep.subr.mxu0 0.0
  %278 = vmatpush1.msra.mxu0 0.0
  %279 = vmatprep.subr.mxu0 0.0
  %280 = vmatpush1.msra.mxu0 0.0
  %281 = vmatprep.subr.mxu0 0.0
  %282 = vmatpush1.msra.mxu0 0.0
  %283 = vmatprep.subr.mxu0 0.0
  %284 = vmatpush1.msra.mxu0 0.0
  %285 = vmatprep.subr.mxu0 0.0
  %286 = vmatpush1.msra.mxu0 0.0
  %287 = vmatprep.subr.mxu0 0.0
  %288 = vmatpush1.msra.mxu0 0.0
  %289 = vmatprep.subr.mxu0 0.0
  %290 = vmatpush1.msra.mxu0 0.0
  %291 = vmatprep.subr.mxu0 0.0
  %292 = vmatpush1.msra.mxu0 0.0
  %293 = vmatprep.subr.mxu0 0.0
  %294 = vmatpush1.msra.mxu0 0.0
  %295 = vmatprep.subr.mxu0 0.0
  %296 = vmatpush1.msra.mxu0 0.0
  %297 = vmatprep.subr.mxu0 0.0
  %298 = vmatpush1.msra.mxu0 0.0
  %299 = vmatprep.subr.mxu0 0.0
  %300 = vmatpush1.msra.mxu0 0.0
  %301 = vmatprep.subr.mxu0 0.0
  %302 = vmatpush1.msra.mxu0 0.0
  %303 = vmatprep.subr.mxu0 0.0
  %304 = vmatpush1.msra.mxu0 0.0
  %305 = vmatprep.subr.mxu0 0.0
  %306 = vmatpush1.msra.mxu0 0.0
  %307 = vmatprep.subr.mxu0 0.0
  %308 = vmatpush1.msra.mxu0 0.0
  %309 = vmatprep.subr.mxu0 0.0
  %310 = vmatpush1.msra.mxu0 0.0
  %311 = vmatprep.subr.mxu0 0.0
  %312 = vmatpush1.msra.mxu0 0.0
  %313 = vmatprep.subr.mxu0 0.0
  %314 = vmatpush1.msra.mxu0 0.0
  %315 = vmatprep.subr.mxu0 0.0
  %316 = vmatpush1.msra.mxu0 0.0
  %317 = vmatprep.mubr.f32.mxu0 0.0
  %318 = vmatmul.mubr.f32.gmra.mrb[0].mxu0 %v251
  %v319 = vpop.f32.mrb[0].mxu0
  %v320 = vadd.f32 %v247, %v319
  %v321 = vpop.f32.mrb[0].mxu0
  %322 = vdwg.mxu0
  %vm323 = vcmask 7168
  %324 = vst.msk [vmem:[%s5] sm:$0xff] %vm323, %v320
  // Predicated region
  $region22: #{advanced_nn_classifier.1} parent=0 // pred_check
    _
  $region23: #{advanced_nn_classifier.1} parent=0 // pred_check_branch
    %326 = sbr.rel (0) target = $region25
  $region24: #{advanced_nn_classifier.1} parent=0 // pred_region
    _
  $region25: #{advanced_nn_classifier.1} parent=0 // pred_fallthru
    _
  // Predicated region
  $region26: #{advanced_nn_classifier.1} parent=0 // pred_check
    _
  $region27: #{advanced_nn_classifier.1} parent=0 // pred_check_branch
    %328 = sbr.rel (0) target = $region29
  $region28: #{advanced_nn_classifier.1} parent=0 // pred_region
    _
  $region29: #{advanced_nn_classifier.1} parent=0 // pred_fallthru
    _

</llo_original>
